<compile_context>
chip_gen: v6e
topology: v6e:2x2x1
jax: 0.10.0
libtpu: 0.0.40
codegen_flags: <defaults>
</compile_context>

<pallas_src>
import jax
import jax.numpy as jnp
from jax import lax
from jax.experimental import pallas as pl
from jax.experimental.pallas import tpu as pltpu


def _make_focal_ce_kernel(n_rows, block_n, tiles_per_slice):
    """Kernel producing per-slice partial (sum of CE over valid rows, valid count)."""

    def kernel(logits_ref, labels_ref, lsum_ref, cnt_ref):
        s = pl.program_id(0)   # parallel row-slice axis
        t = pl.program_id(1)   # arbitrary tile axis within the slice

        # Zero the resident per-slice accumulators on the slice's first tile.
        @pl.when(t == 0)
        def _():
            lsum_ref[...] = jnp.zeros_like(lsum_ref)
            cnt_ref[...] = jnp.zeros_like(cnt_ref)

        x = logits_ref[...].astype(jnp.float32)       # (block_n, C) f32 compute
        lbl = labels_ref[...]                         # (block_n, 1) int32

        # Numerically stable per-row log-sum-exp (log-softmax denominator).
        m = jnp.max(x, axis=-1, keepdims=True)                              # (bn, 1)
        lse = m + jnp.log(jnp.sum(jnp.exp(x - m), axis=-1, keepdims=True))  # (bn, 1)

        # Pick the target-class logit via a class-axis compare on the resident tile
        # (C is small; no big one-hot, no MXU).
        cls = lax.broadcasted_iota(jnp.int32, x.shape, 1)                   # (bn, C)
        picked = jnp.sum(jnp.where(cls == lbl, x, 0.0), axis=-1, keepdims=True)

        ce = lse - picked                                                   # (bn, 1)

        # Valid = (label != ignore_index 0) AND (row actually exists).  The ragged
        # last tile (and any clamped overflow tile) is masked here instead of being
        # padded in HBM; jnp.where (select) keeps NaN/inf in dead rows from leaking.
        tile = s * tiles_per_slice + t                      # logical (unclamped) tile
        rows = tile * block_n + lax.broadcasted_iota(jnp.int32, lbl.shape, 0)
        valid = jnp.logical_and(lbl != 0, rows < n_rows)

        lsum_ref[...] += jnp.sum(jnp.where(valid, ce, 0.0))
        cnt_ref[...] += jnp.sum(valid.astype(jnp.float32))

    return kernel


def _default_block_n(n_rows, n_classes, itemsize):
    """Row-tile size budgeted at ~1 MiB per logits VMEM buffer (lane-padded)."""
    lane_c = max(128, ((n_classes + 127) // 128) * 128)   # C < 128 pads to 128 lanes
    target_bytes = 1 << 20                                # ~1 MiB per logits buffer
    bn = target_bytes // (lane_c * max(int(itemsize), 1))
    bn = max(128, (bn // 128) * 128)                      # multiple of 128 (covers bf16 packing)
    bn = min(bn, max(128, ((n_rows + 127) // 128) * 128)) # don't over-tile small inputs
    return int(bn)


def focal_loss_ce(pred, gt, alpha, gamma, *, block_n=None, n_slices=2):
    """pred: (N, C) float logits (any float dtype); gt: (N,) int class ids (0 = ignore).

    Returns the scalar focal loss: alpha * (1 - exp(-ce))**gamma * ce, where ce is the
    mean cross-entropy over rows whose label != 0.
    """
    # TODO(synk): only the (N, C) / (N,) layout is handled; higher-rank PyTorch CE
    # inputs (N, C, d1, ...) would need a flatten-to-rows wrapper.
    N, C = pred.shape
    itemsize = jnp.dtype(pred.dtype).itemsize
    if block_n is None:
        block_n = _default_block_n(N, C, itemsize)

    num_tiles = -(-N // block_n)
    n_slices = max(1, min(int(n_slices), num_tiles))
    tiles_per_slice = -(-num_tiles // n_slices)

    labels = gt.astype(jnp.int32).reshape(N, 1)           # tiny; no logits cast/pad

    def row_block(s, t):
        # Clamp so overflow tiles (when n_slices*tiles_per_slice > num_tiles) re-read
        # a valid block; their contribution is zeroed by the in-kernel row mask.
        tile = s * tiles_per_slice + t
        return (jnp.minimum(tile, num_tiles - 1), 0)

    kernel = _make_focal_ce_kernel(N, block_n, tiles_per_slice)

    cost = pl.CostEstimate(
        flops=int(5 * N * C),
        transcendentals=int(N * C),
        bytes_accessed=int(N * C * itemsize + N * 4),
    )

    lsum, cnt = pl.pallas_call(
        kernel,
        out_shape=(
            jax.ShapeDtypeStruct((n_slices, 1, 1), jnp.float32),
            jax.ShapeDtypeStruct((n_slices, 1, 1), jnp.float32),
        ),
        grid_spec=pltpu.PrefetchScalarGridSpec(
            num_scalar_prefetch=0,
            grid=(n_slices, tiles_per_slice),
            in_specs=[
                pl.BlockSpec((block_n, C), row_block),     # logits tile (native dtype)
                pl.BlockSpec((block_n, 1), row_block),     # labels column
            ],
            out_specs=[
                pl.BlockSpec((1, 1, 1), lambda s, t: (s, 0, 0)),   # per-slice CE sum
                pl.BlockSpec((1, 1, 1), lambda s, t: (s, 0, 0)),   # per-slice valid count
            ],
        ),
        compiler_params=pltpu.CompilerParams(
            dimension_semantics=("parallel", "arbitrary"),
            vmem_limit_bytes=32 * 1024 * 1024,
        ),
        cost_estimate=cost,
    )(pred, labels)

    # Scalar finalize (runs as plain XLA in the wrapper): mean CE over valid rows,
    # then the focal weighting.  cnt == 0 yields NaN, matching PyTorch.
    ce = jnp.sum(lsum[:, 0, 0]) / jnp.sum(cnt[:, 0, 0])
    pt = jnp.exp(-ce)
    return jnp.float32(alpha) * (1.0 - pt) ** jnp.float32(gamma) * ce


def _reference(pred, gt, alpha, gamma):
    logp = jax.nn.log_softmax(pred.astype(jnp.float32), axis=-1)
    ce_per = -jnp.take_along_axis(logp, gt[:, None].astype(jnp.int32), axis=-1)[:, 0]
    valid = (gt != 0).astype(jnp.float32)
    ce = jnp.sum(ce_per * valid) / jnp.sum(valid)
    pt = jnp.exp(-ce)
    return alpha * (1.0 - pt) ** gamma * ce


if __name__ == "__main__":
    alpha, gamma = 0.25, 2.0
    N, C = 300, 32   # small; ragged vs block_n=128, exercises masking + 2-slice grid

    key = jax.random.PRNGKey(0)
    k1, k2 = jax.random.split(key)
    pred = jax.random.normal(k1, (N, C), dtype=jnp.float32)
    gt = jax.random.randint(k2, (N,), 0, C, dtype=jnp.int32)   # includes 0s (ignored)

    # f32 path, small explicit tile so multiple grid steps / ragged tail are exercised.
    loss = jax.block_until_ready(
        focal_loss_ce(pred, gt, alpha, gamma, block_n=128, n_slices=2))
    ref = jax.block_until_ready(_reference(pred, gt, alpha, gamma))
    assert jnp.allclose(loss, ref, rtol=1e-5, atol=1e-5), (loss, ref)

    # Native bf16 streaming path (no wrapper cast), default VMEM-budgeted tile.
    pred_bf16 = pred.astype(jnp.bfloat16)
    loss_bf = jax.block_until_ready(focal_loss_ce(pred_bf16, gt, alpha, gamma))
    ref_bf = jax.block_until_ready(
        _reference(pred_bf16.astype(jnp.float32), gt, alpha, gamma))
    assert jnp.allclose(loss_bf, ref_bf, rtol=1e-3, atol=1e-3), (loss_bf, ref_bf)

    print("KERNEL_OK")
</pallas_src>

<mosaic_0001>
module attributes {stable_mosaic.version = 11 : i64} {
  func.func @kernel(%arg0: i32, %arg1: i32, %arg2: memref<128x32xf32, #tpu.memory_space<vmem>>, %arg3: memref<128x1xi32, #tpu.memory_space<vmem>>, %arg4: memref<1x1x1xf32, #tpu.memory_space<vmem>>, %arg5: memref<1x1x1xf32, #tpu.memory_space<vmem>>) attributes {dimension_semantics = [#tpu.dimension_semantics<parallel>, #tpu.dimension_semantics<arbitrary>], iteration_bounds = array<i64: 2, 2>, scalar_prefetch = 0 : i64, scratch_operands = 0 : i64, tpu.core_type = #tpu.core_type<tc>, window_params = [{transform_indices = @transform_0, window_bounds = array<i64: 128, 32>}, {transform_indices = @transform_1, window_bounds = array<i64: 128, 1>}, {transform_indices = @transform_2, window_bounds = array<i64: 1, 1, 1>}, {transform_indices = @transform_3, window_bounds = array<i64: 1, 1, 1>}]} {
    %c0_i32 = arith.constant 0 : i32
    %0 = arith.cmpi eq, %arg1, %c0_i32 : i32
    %1 = arith.extui %0 : i1 to i32
    %c0_i32_0 = arith.constant 0 : i32
    %2 = arith.cmpi ne, %1, %c0_i32_0 : i32
    scf.if %2 {
      %cst_23 = arith.constant 0.000000e+00 : f32
      %53 = vector.broadcast %cst_23 : f32 to vector<1x1x1xf32>
      %c0_24 = arith.constant 0 : index
      %c0_25 = arith.constant 0 : index
      %c0_26 = arith.constant 0 : index
      %54 = vector.load %arg4[%c0_24, %c0_25, %c0_26] : memref<1x1x1xf32, #tpu.memory_space<vmem>>, vector<1x1x1xf32>
      tpu.vector_store %arg4[%c0_24, %c0_25, %c0_26], %53 {strides = array<i32>} : memref<1x1x1xf32, #tpu.memory_space<vmem>>, vector<1x1x1xf32>,
      %cst_27 = arith.constant 0.000000e+00 : f32
      %55 = vector.broadcast %cst_27 : f32 to vector<1x1x1xf32>
      %c0_28 = arith.constant 0 : index
      %c0_29 = arith.constant 0 : index
      %c0_30 = arith.constant 0 : index
      %56 = vector.load %arg5[%c0_28, %c0_29, %c0_30] : memref<1x1x1xf32, #tpu.memory_space<vmem>>, vector<1x1x1xf32>
      tpu.vector_store %arg5[%c0_28, %c0_29, %c0_30], %55 {strides = array<i32>} : memref<1x1x1xf32, #tpu.memory_space<vmem>>, vector<1x1x1xf32>,
    } else {
    }
    %c0 = arith.constant 0 : index
    %c0_1 = arith.constant 0 : index
    %3 = vector.load %arg2[%c0, %c0_1] : memref<128x32xf32, #tpu.memory_space<vmem>>, vector<128x32xf32>
    %c0_2 = arith.constant 0 : index
    %c0_3 = arith.constant 0 : index
    %4 = vector.load %arg3[%c0_2, %c0_3] : memref<128x1xi32, #tpu.memory_space<vmem>>, vector<128x1xi32>
    %cst = arith.constant dense<0xFF800000> : vector<128xf32>
    %5 = vector.multi_reduction <maximumf>, %3, %cst [1] : vector<128x32xf32> to vector<128xf32>
    %6 = vector.shape_cast %5 : vector<128xf32> to vector<128x1xf32>
    %7 = vector.broadcast %6 : vector<128x1xf32> to vector<128x32xf32>
    %8 = arith.subf %3, %7 : vector<128x32xf32>
    %9 = math.exp %8 : vector<128x32xf32>
    %cst_4 = arith.constant dense<0.000000e+00> : vector<128xf32>
    %10 = vector.multi_reduction <add>, %9, %cst_4 [1] : vector<128x32xf32> to vector<128xf32>
    %11 = vector.shape_cast %10 : vector<128xf32> to vector<128x1xf32>
    %12 = math.log %11 : vector<128x1xf32>
    %13 = arith.addf %6, %12 : vector<128x1xf32>
    %14 = tpu.iota {dimensions = array<i32: 1>} : vector<128x32xi32>
    %15 = vector.broadcast %4 : vector<128x1xi32> to vector<128x32xi32>
    %16 = arith.cmpi eq, %14, %15 : vector<128x32xi32>
    %cst_5 = arith.constant 0.000000e+00 : f32
    %17 = vector.broadcast %cst_5 : f32 to vector<128x32xf32>
    %18 = arith.select %16, %3, %17 : vector<128x32xi1>, vector<128x32xf32>
    %cst_6 = arith.constant dense<0.000000e+00> : vector<128xf32>
    %19 = vector.multi_reduction <add>, %18, %cst_6 [1] : vector<128x32xf32> to vector<128xf32>
    %20 = vector.shape_cast %19 : vector<128xf32> to vector<128x1xf32>
    %21 = arith.subf %13, %20 : vector<128x1xf32>
    %c2_i32 = arith.constant 2 : i32
    %22 = arith.muli %arg0, %c2_i32 : i32
    %23 = arith.addi %22, %arg1 : i32
    %c128_i32 = arith.constant 128 : i32
    %24 = arith.muli %23, %c128_i32 : i32
    %25 = tpu.iota {dimensions = array<i32: 0>} : vector<128x1xi32>
    %26 = vector.broadcast %24 : i32 to vector<128x1xi32>
    %27 = arith.addi %26, %25 : vector<128x1xi32>
    %c0_i32_7 = arith.constant 0 : i32
    %28 = vector.broadcast %c0_i32_7 : i32 to vector<128x1xi32>
    %29 = arith.cmpi ne, %4, %28 : vector<128x1xi32>
    %c300_i32 = arith.constant 300 : i32
    %30 = vector.broadcast %c300_i32 : i32 to vector<128x1xi32>
    %31 = arith.cmpi slt, %27, %30 : vector<128x1xi32>
    %32 = arith.andi %29, %31 : vector<128x1xi1>
    %c0_8 = arith.constant 0 : index
    %c0_9 = arith.constant 0 : index
    %c0_10 = arith.constant 0 : index
    %33 = vector.load %arg4[%c0_8, %c0_9, %c0_10] : memref<1x1x1xf32, #tpu.memory_space<vmem>>, vector<1x1x1xf32>
    %cst_11 = arith.constant 0.000000e+00 : f32
    %34 = vector.broadcast %cst_11 : f32 to vector<128x1xf32>
    %35 = arith.select %32, %21, %34 : vector<128x1xi1>, vector<128x1xf32>
    %36 = vector.shape_cast %35 : vector<128x1xf32> to vector<1x128x1xf32>
    %cst_12 = arith.constant dense<0.000000e+00> : vector<1xf32>
    %37 = vector.multi_reduction <add>, %36, %cst_12 [1, 2] : vector<1x128x1xf32> to vector<1xf32>
    %38 = vector.shape_cast %37 : vector<1xf32> to vector<1x1x1xf32>
    %39 = vector.extract %38[0, 0, 0] : f32 from vector<1x1x1xf32>
    %40 = vector.broadcast %39 : f32 to vector<1x1x1xf32>
    %41 = arith.addf %33, %40 : vector<1x1x1xf32>
    %c0_13 = arith.constant 0 : index
    %c0_14 = arith.constant 0 : index
    %c0_15 = arith.constant 0 : index
    %42 = vector.load %arg4[%c0_13, %c0_14, %c0_15] : memref<1x1x1xf32, #tpu.memory_space<vmem>>, vector<1x1x1xf32>
    tpu.vector_store %arg4[%c0_13, %c0_14, %c0_15], %41 {strides = array<i32>} : memref<1x1x1xf32, #tpu.memory_space<vmem>>, vector<1x1x1xf32>,
    %c0_16 = arith.constant 0 : index
    %c0_17 = arith.constant 0 : index
    %c0_18 = arith.constant 0 : index
    %43 = vector.load %arg5[%c0_16, %c0_17, %c0_18] : memref<1x1x1xf32, #tpu.memory_space<vmem>>, vector<1x1x1xf32>
    %44 = arith.extui %32 : vector<128x1xi1> to vector<128x1xi32>
    %45 = arith.sitofp %44 : vector<128x1xi32> to vector<128x1xf32>
    %46 = vector.shape_cast %45 : vector<128x1xf32> to vector<1x128x1xf32>
    %cst_19 = arith.constant dense<0.000000e+00> : vector<1xf32>
    %47 = vector.multi_reduction <add>, %46, %cst_19 [1, 2] : vector<1x128x1xf32> to vector<1xf32>
    %48 = vector.shape_cast %47 : vector<1xf32> to vector<1x1x1xf32>
    %49 = vector.extract %48[0, 0, 0] : f32 from vector<1x1x1xf32>
    %50 = vector.broadcast %49 : f32 to vector<1x1x1xf32>
    %51 = arith.addf %43, %50 : vector<1x1x1xf32>
    %c0_20 = arith.constant 0 : index
    %c0_21 = arith.constant 0 : index
    %c0_22 = arith.constant 0 : index
    %52 = vector.load %arg5[%c0_20, %c0_21, %c0_22] : memref<1x1x1xf32, #tpu.memory_space<vmem>>, vector<1x1x1xf32>
    tpu.vector_store %arg5[%c0_20, %c0_21, %c0_22], %51 {strides = array<i32>} : memref<1x1x1xf32, #tpu.memory_space<vmem>>, vector<1x1x1xf32>,
    return
  }
  func.func @transform_0(%arg0: i32, %arg1: i32) -> (i32, i32) {
    %c2_i32 = arith.constant 2 : i32
    %0 = arith.muli %arg0, %c2_i32 : i32
    %1 = arith.addi %0, %arg1 : i32
    %c2_i32_0 = arith.constant 2 : i32
    %2 = arith.minsi %1, %c2_i32_0 : i32
    %c0_i32 = arith.constant 0 : i32
    %c0_i32_1 = arith.constant 0 : i32
    return %2, %c0_i32 : i32, i32
  }
  func.func @transform_1(%arg0: i32, %arg1: i32) -> (i32, i32) {
    %c2_i32 = arith.constant 2 : i32
    %0 = arith.muli %arg0, %c2_i32 : i32
    %1 = arith.addi %0, %arg1 : i32
    %c2_i32_0 = arith.constant 2 : i32
    %2 = arith.minsi %1, %c2_i32_0 : i32
    %c0_i32 = arith.constant 0 : i32
    %c0_i32_1 = arith.constant 0 : i32
    return %2, %c0_i32 : i32, i32
  }
  func.func @transform_2(%arg0: i32, %arg1: i32) -> (i32, i32, i32) {
    %c0_i32 = arith.constant 0 : i32
    %c0_i32_0 = arith.constant 0 : i32
    %c0_i32_1 = arith.constant 0 : i32
    return %arg0, %c0_i32, %c0_i32_0 : i32, i32, i32
  }
  func.func @transform_3(%arg0: i32, %arg1: i32) -> (i32, i32, i32) {
    %c0_i32 = arith.constant 0 : i32
    %c0_i32_0 = arith.constant 0 : i32
    %c0_i32_1 = arith.constant 0 : i32
    return %arg0, %c0_i32, %c0_i32_0 : i32, i32, i32
  }
}

</mosaic_0001>

<llo_original>
// kernel: tpu_custom_call.1
$region0: #{tpu_custom_call.1}
  #allocation0 [shape = 'u32[]', space=smem, size = 0x4, offset = 0x4, fixed_abs, tag = 'smem constant byte address 0x4 - core index']
  #allocation1 [shape = 'u32[144,128]{1,0:T(1,128)}', space=vmem, size = 0x12000, scoped, tag = 'internal scratch']
  %s0 = inlined_call_operand.vmem [shape: f32[300,32], index: 0, kind: input, shape index: {}]
  %s1 = inlined_call_operand.vmem [shape: s32[300,1], index: 1, kind: input, shape index: {}]
  %s2 = inlined_call_operand.vmem [shape: f32[2,1,1], index: 2, kind: output, shape index: {0}]
  %s3 = inlined_call_operand.vmem [shape: f32[2,1,1], index: 3, kind: output, shape index: {1}]
  %4 = xla_tuple %s2, %s3
  %s5 = sld [smem:[#allocation0]]
  $region53: #{tpu_custom_call.1} parent=0
    _
  %s7 = ssub.s32 1, %s5
  %s8 = scalar_select 0, %s7, %s5
  loop: start=0, step=1, limit=6
  $region2: #{tpu_custom_call.1} parent=0 // loop_pre_header
    _
  $region3: #{tpu_custom_call.1} parent=0 // loop_header
    %s10 = sphi 0, %s14
    %p11 = scmp.ge.s32.totalorder %s10, 6
    %s17 = sphi 0, %s29
    %s18 = sphi 0, %s25
    %s19 = sphi 0, %s17
    %s20 = sphi 0, %s18
    %s21 = sphi 0, %s19
    %s22 = sphi 0, %s20
    %s40 = sphi 0, %s42
    %s43 = sphi 0, %s40
    %s44 = sphi 0, %s43
    %s60 = sphi 0, %s44
    %s74 = sphi 0, %s76
    %s77 = sphi 0, %s74
    %s78 = sphi 0, %s77
    %s94 = sphi 0, %s78
    %s100 = sphi 0, %s102
    %s103 = sphi 0, %s100
    %s104 = sphi 0, %s103
    %s120 = sphi 0, %s104
    %s126 = sphi 0, %s128
    %s129 = sphi 0, %s126
    %s130 = sphi 0, %s129
    %s146 = sphi 0, %s130
  $region4: #{tpu_custom_call.1} parent=0 // loop_header_branch
    %13 = sbr.rel (%p11) target = $region8
  $region5: #{tpu_custom_call.1} parent=0 // loop_body
    %s15 = ssub.s32 %s10, 1
    %s16 = ssub.s32 %s10, 2
    %s23 = sadd.s32 1, %s18
    %p24 = scmp.ge.s32.totalorder %s23, 2
    %s25 = scalar_select %p24, 0, %s23
    %s26 = sadd.s32 1, %s17
    %s27 = scalar_select %p24, %s26, %s17
    %p28 = scmp.ge.s32.totalorder %s27, 2
    %s29 = scalar_select %p28, 0, %s27
    %s30 = smul.u32 %s17, 2
    %s31 = sadd.s32 %s30, %s18
    %p32 = scmp.lt.s32.totalorder %s31, 2
    %s33 = scalar_select %p32, %s31, 2
    %s34 = smul.u32 %s29, 2
    %s35 = sadd.s32 %s34, %s25
    %p36 = scmp.lt.s32.totalorder %s35, 2
    %s37 = scalar_select %p36, %s35, 2
    %s38 = ssub.s32 %s33, %s37
    %p39 = scmp.eq.s32.totalorder %s38, 0
    %s41 = sadd.s32 %s40, 1
    %s42 = scalar_select %p39, %s40, %s41
    %p45 = pneg %p39
    %p46 = scmp.eq.s32.totalorder %s10, 3
    %p47 = por %p45, %p46
    %p48 = scmp.ne.s32.totalorder %s40, %s43
    %p49 = scmp.eq.s32.totalorder %s10, 0
    %p50 = por %p48, %p49
    %p51 = scmp.ne.s32.totalorder %s40, %s43
    %p52 = scmp.eq.s32.totalorder %s15, 3
    %p53 = por %p51, %p52
    %p54 = scmp.ne.s32.totalorder %s43, %s44
    %p55 = scmp.eq.s32.totalorder %s15, 0
    %p56 = por %p54, %p55
    %p57 = scmp.ne.s32.totalorder %s43, %s44
    %p58 = scmp.eq.s32.totalorder %s16, 3
    %p59 = por %p57, %p58
    %p61 = scmp.ne.s32.totalorder %s44, %s60
    %p62 = scmp.eq.s32.totalorder %s16, 0
    %p63 = por %p61, %p62
    %s64 = smul.u32 %s17, 2
    %s65 = sadd.s32 %s64, %s18
    %p66 = scmp.lt.s32.totalorder %s65, 2
    %s67 = scalar_select %p66, %s65, 2
    %s68 = smul.u32 %s29, 2
    %s69 = sadd.s32 %s68, %s25
    %p70 = scmp.lt.s32.totalorder %s69, 2
    %s71 = scalar_select %p70, %s69, 2
    %s72 = ssub.s32 %s67, %s71
    %p73 = scmp.eq.s32.totalorder %s72, 0
    %s75 = sadd.s32 %s74, 1
    %s76 = scalar_select %p73, %s74, %s75
    %p79 = pneg %p73
    %p80 = scmp.eq.s32.totalorder %s10, 3
    %p81 = por %p79, %p80
    %p82 = scmp.ne.s32.totalorder %s74, %s77
    %p83 = scmp.eq.s32.totalorder %s10, 0
    %p84 = por %p82, %p83
    %p85 = scmp.ne.s32.totalorder %s74, %s77
    %p86 = scmp.eq.s32.totalorder %s15, 3
    %p87 = por %p85, %p86
    %p88 = scmp.ne.s32.totalorder %s77, %s78
    %p89 = scmp.eq.s32.totalorder %s15, 0
    %p90 = por %p88, %p89
    %p91 = scmp.ne.s32.totalorder %s77, %s78
    %p92 = scmp.eq.s32.totalorder %s16, 3
    %p93 = por %p91, %p92
    %p95 = scmp.ne.s32.totalorder %s78, %s94
    %p96 = scmp.eq.s32.totalorder %s16, 0
    %p97 = por %p95, %p96
    %s98 = ssub.s32 %s17, %s29
    %p99 = scmp.eq.s32.totalorder %s98, 0
    %s101 = sadd.s32 %s100, 1
    %s102 = scalar_select %p99, %s100, %s101
    %p105 = pneg %p99
    %p106 = scmp.eq.s32.totalorder %s10, 3
    %p107 = por %p105, %p106
    %p108 = scmp.ne.s32.totalorder %s100, %s103
    %p109 = scmp.eq.s32.totalorder %s10, 0
    %p110 = por %p108, %p109
    %p111 = scmp.ne.s32.totalorder %s100, %s103
    %p112 = scmp.eq.s32.totalorder %s15, 3
    %p113 = por %p111, %p112
    %p114 = scmp.ne.s32.totalorder %s103, %s104
    %p115 = scmp.eq.s32.totalorder %s15, 0
    %p116 = por %p114, %p115
    %p117 = scmp.ne.s32.totalorder %s103, %s104
    %p118 = scmp.eq.s32.totalorder %s16, 3
    %p119 = por %p117, %p118
    %p121 = scmp.ne.s32.totalorder %s104, %s120
    %p122 = scmp.eq.s32.totalorder %s16, 0
    %p123 = por %p121, %p122
    %s124 = ssub.s32 %s17, %s29
    %p125 = scmp.eq.s32.totalorder %s124, 0
    %s127 = sadd.s32 %s126, 1
    %s128 = scalar_select %p125, %s126, %s127
    %p131 = pneg %p125
    %p132 = scmp.eq.s32.totalorder %s10, 3
    %p133 = por %p131, %p132
    %p134 = scmp.ne.s32.totalorder %s126, %s129
    %p135 = scmp.eq.s32.totalorder %s10, 0
    %p136 = por %p134, %p135
    %p137 = scmp.ne.s32.totalorder %s126, %s129
    %p138 = scmp.eq.s32.totalorder %s15, 3
    %p139 = por %p137, %p138
    %p140 = scmp.ne.s32.totalorder %s129, %s130
    %p141 = scmp.eq.s32.totalorder %s15, 0
    %p142 = por %p140, %p141
    %p143 = scmp.ne.s32.totalorder %s129, %s130
    %p144 = scmp.eq.s32.totalorder %s16, 3
    %p145 = por %p143, %p144
    %p147 = scmp.ne.s32.totalorder %s130, %s146
    %p148 = scmp.eq.s32.totalorder %s16, 0
    %p149 = por %p147, %p148
    %p150 = scmp.le.s32.totalorder 1, %s10
    %p151 = scmp.lt.s32.totalorder %s10, 5
    %p152 = pnand %p150, %p151
    %p153 = pneg %p152
    // Predicated region
    $region9: #{tpu_custom_call.1} parent=5 // pred_check
      _
    $region10: #{tpu_custom_call.1} parent=5 // pred_check_branch
      %155 = sbr.rel (%p152) target = $region12
    $region11: #{tpu_custom_call.1} parent=5 // pred_region
      %s156 = ssub.s32 %s10, 1
    $region12: #{tpu_custom_call.1} parent=5 // pred_fallthru
      _
    %p157 = scmp.lt.s32.totalorder %s10, 4
    // Predicated region
    $region13: #{tpu_custom_call.1} parent=5 // pred_check
      %p158 = pneg %p157
    $region14: #{tpu_custom_call.1} parent=5 // pred_check_branch
      %160 = sbr.rel (%p158) target = $region16
    $region15: #{tpu_custom_call.1} parent=5 // pred_region
      // Predicated region
      $region17: #{tpu_custom_call.1} parent=15 // pred_check
        %p161 = pneg %p50
      $region18: #{tpu_custom_call.1} parent=15 // pred_check_branch
        %163 = sbr.rel (%p161) target = $region20
      $region19: #{tpu_custom_call.1} parent=15 // pred_region
        %s164 = smul.u32 %s17, 2
        %s165 = sadd.s32 %s164, %s18
        %p166 = scmp.lt.s32.totalorder %s165, 2
        %s167 = scalar_select %p166, %s165, 2
        %s168 = smul.u32 16, %s167
        %s169 = ssub.s32 38, %s168
        %p170 = scmp.lt.s32.totalorder %s169, 16
        %s171 = scalar_select %p170, %s169, 16
        %s172 = smul.u32 128, %s171
        %p173 = scmp.lt.s32.totalorder %s168, 37
        %s174 = scalar_select %p173, %s168, 37
        %s175 = smul.addr %s174, 8
        %s176 = scalar_lea.vmem %s0, %s175
        %s177 = smul.u32 %s17, 2
        %s178 = sadd.s32 %s177, %s18
        %p179 = scmp.lt.s32.totalorder %s178, 2
        %s180 = scalar_select %p179, %s178, 2
        %s181 = smul.u32 16, %s180
        %s182 = ssub.s32 38, %s181
        %p183 = scmp.lt.s32.totalorder %s182, 16
        %s184 = scalar_select %p183, %s182, 16
        %s185 = smul.u32 128, %s184
      $region20: #{tpu_custom_call.1} parent=15 // pred_fallthru
        _
      // Predicated region
      $region21: #{tpu_custom_call.1} parent=15 // pred_check
        %p186 = pneg %p84
      $region22: #{tpu_custom_call.1} parent=15 // pred_check_branch
        %188 = sbr.rel (%p186) target = $region24
      $region23: #{tpu_custom_call.1} parent=15 // pred_region
        %s189 = smul.u32 %s17, 2
        %s190 = sadd.s32 %s189, %s18
        %p191 = scmp.lt.s32.totalorder %s190, 2
        %s192 = scalar_select %p191, %s190, 2
        %s193 = smul.u32 16, %s192
        %s194 = ssub.s32 38, %s193
        %p195 = scmp.lt.s32.totalorder %s194, 16
        %s196 = scalar_select %p195, %s194, 16
        %s197 = smul.u32 128, %s196
        %p198 = scmp.lt.s32.totalorder %s193, 37
        %s199 = scalar_select %p198, %s193, 37
        %s200 = smul.addr %s199, 8
        %s201 = scalar_lea.vmem %s1, %s200
        %s202 = smul.u32 %s17, 2
        %s203 = sadd.s32 %s202, %s18
        %p204 = scmp.lt.s32.totalorder %s203, 2
        %s205 = scalar_select %p204, %s203, 2
        %s206 = smul.u32 16, %s205
        %s207 = ssub.s32 38, %s206
        %p208 = scmp.lt.s32.totalorder %s207, 16
        %s209 = scalar_select %p208, %s207, 16
        %s210 = smul.u32 128, %s209
      $region24: #{tpu_custom_call.1} parent=15 // pred_fallthru
        _
    $region16: #{tpu_custom_call.1} parent=5 // pred_fallthru
      _
    %p211 = scmp.le.s32.totalorder 1, %s10
    %p212 = scmp.lt.s32.totalorder %s10, 5
    %p213 = pnand %p211, %p212
    %p214 = pneg %p213
    // Predicated region
    $region25: #{tpu_custom_call.1} parent=5 // pred_check
      _
    $region26: #{tpu_custom_call.1} parent=5 // pred_check_branch
      %216 = sbr.rel (%p213) target = $region28
    $region27: #{tpu_custom_call.1} parent=5 // pred_region
      %s217 = ssub.s32 %s10, 1
      %s218 = smul.u32 %s19, 2
      %s219 = sadd.s32 %s218, %s20
      %p220 = scmp.lt.s32.totalorder %s219, 2
      %s221 = scalar_select %p220, %s219, 2
      %s222 = smul.u32 16, %s221
      %s223 = ssub.s32 38, %s222
      %p224 = scmp.lt.s32.totalorder %s223, 16
      %s225 = scalar_select %p224, %s223, 16
      %s226 = smul.u32 128, %s225
      %p227 = scmp.lt.s32.totalorder %s222, 37
      %s228 = scalar_select %p227, %s222, 37
      %s229 = smul.addr %s228, 8
      %s230 = scalar_lea.vmem %s0, %s229
      %p231 = pneg %p56
      %p232 = pneg %p53
      %s233 = smul.u32 %s19, 2
      %s234 = sadd.s32 %s233, %s20
      %p235 = scmp.lt.s32.totalorder %s234, 2
      %s236 = scalar_select %p235, %s234, 2
      %s237 = smul.u32 16, %s236
      %s238 = ssub.s32 38, %s237
      %p239 = scmp.lt.s32.totalorder %s238, 16
      %s240 = scalar_select %p239, %s238, 16
      %s241 = smul.u32 128, %s240
      %p242 = scmp.lt.s32.totalorder %s237, 37
      %s243 = scalar_select %p242, %s237, 37
      %s244 = smul.addr %s243, 8
      %s245 = scalar_lea.vmem %s1, %s244
      %p246 = pneg %p90
      %p247 = pneg %p87
      %p248 = pneg %p116
      %p249 = pneg %p113
      %p250 = scmp.lt.s32.totalorder %s19, 1
      %s251 = scalar_select %p250, %s19, 1
      %s252 = scalar_lea.vmem %s2, %s251
      %p253 = pneg %p142
      %p254 = pneg %p139
      %p255 = scmp.lt.s32.totalorder %s19, 1
      %s256 = scalar_select %p255, %s19, 1
      %s257 = scalar_lea.vmem %s3, %s256
      %s258 = smul.u32 %s19, 2
      %s259 = sadd.s32 %s258, %s20
      %p260 = scmp.lt.s32.totalorder %s259, 2
      %s261 = scalar_select %p260, %s259, 2
      %s262 = smul.u32 16, %s261
      %s263 = ssub.s32 38, %s262
      %p264 = scmp.lt.s32.totalorder %s263, 16
      %s265 = scalar_select %p264, %s263, 16
      %s266 = smul.u32 128, %s265
      %p267 = scmp.lt.s32.totalorder %s262, 37
      %s268 = scalar_select %p267, %s262, 37
      %s269 = smul.addr %s268, 8
      %s270 = scalar_lea.vmem %s0, %s269
      %s271 = smul.u32 %s19, 2
      %s272 = sadd.s32 %s271, %s20
      %p273 = scmp.lt.s32.totalorder %s272, 2
      %s274 = scalar_select %p273, %s272, 2
      %s275 = smul.u32 16, %s274
      %s276 = ssub.s32 38, %s275
      %p277 = scmp.lt.s32.totalorder %s276, 16
      %s278 = scalar_select %p277, %s276, 16
      %s279 = smul.u32 128, %s278
      %s280 = smul.u32 %s19, 2
      %s281 = sadd.s32 %s280, %s20
      %p282 = scmp.lt.s32.totalorder %s281, 2
      %s283 = scalar_select %p282, %s281, 2
      %s284 = smul.u32 16, %s283
      %s285 = ssub.s32 38, %s284
      %p286 = scmp.lt.s32.totalorder %s285, 16
      %s287 = scalar_select %p286, %s285, 16
      %s288 = smul.u32 128, %s287
      %p289 = scmp.lt.s32.totalorder %s284, 37
      %s290 = scalar_select %p289, %s284, 37
      %s291 = smul.addr %s290, 8
      %s292 = scalar_lea.vmem %s1, %s291
      %s293 = smul.u32 %s19, 2
      %s294 = sadd.s32 %s293, %s20
      %p295 = scmp.lt.s32.totalorder %s294, 2
      %s296 = scalar_select %p295, %s294, 2
      %s297 = smul.u32 16, %s296
      %s298 = ssub.s32 38, %s297
      %p299 = scmp.lt.s32.totalorder %s298, 16
      %s300 = scalar_select %p299, %s298, 16
      %s301 = smul.u32 128, %s300
      %p302 = scmp.lt.s32.totalorder %s19, 1
      %s303 = scalar_select %p302, %s19, 1
      %s304 = scalar_lea.vmem %s2, %s303
      %p305 = scmp.lt.s32.totalorder %s19, 1
      %s306 = scalar_select %p305, %s19, 1
      %s307 = scalar_lea.vmem %s3, %s306
      %p308 = scmp.eq.s32.totalorder %s20, 0
      // Predicated region
      $region29: #{tpu_custom_call.1} parent=27 // pred_check
        %p309 = pneg %p308
      $region30: #{tpu_custom_call.1} parent=27 // pred_check_branch
        %311 = sbr.rel (%p309) target = $region32
      $region31: #{tpu_custom_call.1} parent=27 // pred_region
        %vm312 = vcmask 0
        %313 = vst.msk [vmem:[%s304] sm:$0x1] %vm312, 0.0
        %314 = vst.msk [vmem:[%s307] sm:$0x1] %vm312, 0.0
      $region32: #{tpu_custom_call.1} parent=27 // pred_fallthru
        _
      %v315 = vld [vmem:[%s270] sm:$0xff]
      %v316 = vld [vmem:[%s270 + $0x8] sm:$0xff]
      %v317 = vld [vmem:[%s270 + $0x10] sm:$0xff]
      %v318 = vld [vmem:[%s270 + $0x18] sm:$0xff]
      %v319 = vld [vmem:[%s270 + $0x20] sm:$0xff]
      %v320 = vld [vmem:[%s270 + $0x28] sm:$0xff]
      %v321 = vld [vmem:[%s270 + $0x30] sm:$0xff]
      %v322 = vld [vmem:[%s270 + $0x38] sm:$0xff]
      %v323 = vld [vmem:[%s270 + $0x40] sm:$0xff]
      %v324 = vld [vmem:[%s270 + $0x48] sm:$0xff]
      %v325 = vld [vmem:[%s270 + $0x50] sm:$0xff]
      %v326 = vld [vmem:[%s270 + $0x58] sm:$0xff]
      %v327 = vld [vmem:[%s270 + $0x60] sm:$0xff]
      %v328 = vld [vmem:[%s270 + $0x68] sm:$0xff]
      %v329 = vld [vmem:[%s270 + $0x70] sm:$0xff]
      %v330 = vld [vmem:[%s270 + $0x78] sm:$0xff]
      %v331 = vld [vmem:[%s292] sm:$0xff]
      %v332 = vld [vmem:[%s292 + $0x8] sm:$0xff]
      %v333 = vld [vmem:[%s292 + $0x10] sm:$0xff]
      %v334 = vld [vmem:[%s292 + $0x18] sm:$0xff]
      %v335 = vld [vmem:[%s292 + $0x20] sm:$0xff]
      %v336 = vld [vmem:[%s292 + $0x28] sm:$0xff]
      %v337 = vld [vmem:[%s292 + $0x30] sm:$0xff]
      %v338 = vld [vmem:[%s292 + $0x38] sm:$0xff]
      %v339 = vld [vmem:[%s292 + $0x40] sm:$0xff]
      %v340 = vld [vmem:[%s292 + $0x48] sm:$0xff]
      %v341 = vld [vmem:[%s292 + $0x50] sm:$0xff]
      %v342 = vld [vmem:[%s292 + $0x58] sm:$0xff]
      %v343 = vld [vmem:[%s292 + $0x60] sm:$0xff]
      %v344 = vld [vmem:[%s292 + $0x68] sm:$0xff]
      %v345 = vld [vmem:[%s292 + $0x70] sm:$0xff]
      %v346 = vld [vmem:[%s292 + $0x78] sm:$0xff]
      %vm347 = vcmask 261120
      %v348 = vsel %vm347, %v315, -inf
      %349 = vmax.xlane.f32.xlu0 %v348
      %v350 = vpop.xlane.xlu0 %349
      %v351 = vsel %vm347, %v316, -inf
      %352 = vmax.xlane.f32.xlu0 %v351
      %v353 = vpop.xlane.xlu0 %352
      %v354 = vsel %vm347, %v317, -inf
      %355 = vmax.xlane.f32.xlu0 %v354
      %v356 = vpop.xlane.xlu0 %355
      %v357 = vsel %vm347, %v318, -inf
      %358 = vmax.xlane.f32.xlu0 %v357
      %v359 = vpop.xlane.xlu0 %358
      %v360 = vsel %vm347, %v319, -inf
      %361 = vmax.xlane.f32.xlu0 %v360
      %v362 = vpop.xlane.xlu0 %361
      %v363 = vsel %vm347, %v320, -inf
      %364 = vmax.xlane.f32.xlu0 %v363
      %v365 = vpop.xlane.xlu0 %364
      %v366 = vsel %vm347, %v321, -inf
      %367 = vmax.xlane.f32.xlu0 %v366
      %v368 = vpop.xlane.xlu0 %367
      %v369 = vsel %vm347, %v322, -inf
      %370 = vmax.xlane.f32.xlu0 %v369
      %v371 = vpop.xlane.xlu0 %370
      %v372 = vsel %vm347, %v323, -inf
      %373 = vmax.xlane.f32.xlu0 %v372
      %v374 = vpop.xlane.xlu0 %373
      %v375 = vsel %vm347, %v324, -inf
      %376 = vmax.xlane.f32.xlu0 %v375
      %v377 = vpop.xlane.xlu0 %376
      %v378 = vsel %vm347, %v325, -inf
      %379 = vmax.xlane.f32.xlu0 %v378
      %v380 = vpop.xlane.xlu0 %379
      %v381 = vsel %vm347, %v326, -inf
      %382 = vmax.xlane.f32.xlu0 %v381
      %v383 = vpop.xlane.xlu0 %382
      %v384 = vsel %vm347, %v327, -inf
      %385 = vmax.xlane.f32.xlu0 %v384
      %v386 = vpop.xlane.xlu0 %385
      %v387 = vsel %vm347, %v328, -inf
      %388 = vmax.xlane.f32.xlu0 %v387
      %v389 = vpop.xlane.xlu0 %388
      %v390 = vsel %vm347, %v329, -inf
      %391 = vmax.xlane.f32.xlu0 %v390
      %v392 = vpop.xlane.xlu0 %391
      %v393 = vsel %vm347, %v330, -inf
      %394 = vmax.xlane.f32.xlu0 %v393
      %v395 = vpop.xlane.xlu0 %394
      %v396 = vsub.f32 %v315, %v350
      %v397 = vsub.f32 %v316, %v353
      %v398 = vsub.f32 %v317, %v356
      %v399 = vsub.f32 %v318, %v359
      %v400 = vsub.f32 %v319, %v362
      %v401 = vsub.f32 %v320, %v365
      %v402 = vsub.f32 %v321, %v368
      %v403 = vsub.f32 %v322, %v371
      %v404 = vsub.f32 %v323, %v374
      %v405 = vsub.f32 %v324, %v377
      %v406 = vsub.f32 %v325, %v380
      %v407 = vsub.f32 %v326, %v383
      %v408 = vsub.f32 %v327, %v386
      %v409 = vsub.f32 %v328, %v389
      %v410 = vsub.f32 %v329, %v392
      %v411 = vsub.f32 %v330, %v395
      %v412 = vmul.f32 %v396, 1.442695
      %v413 = vpow.pop %v412
      %v414 = vmul.f32 %v397, 1.442695
      %v415 = vpow.pop %v414
      %v416 = vmul.f32 %v398, 1.442695
      %v417 = vpow.pop %v416
      %v418 = vmul.f32 %v399, 1.442695
      %v419 = vpow.pop %v418
      %v420 = vmul.f32 %v400, 1.442695
      %v421 = vpow.pop %v420
      %v422 = vmul.f32 %v401, 1.442695
      %v423 = vpow.pop %v422
      %v424 = vmul.f32 %v402, 1.442695
      %v425 = vpow.pop %v424
      %v426 = vmul.f32 %v403, 1.442695
      %v427 = vpow.pop %v426
      %v428 = vmul.f32 %v404, 1.442695
      %v429 = vpow.pop %v428
      %v430 = vmul.f32 %v405, 1.442695
      %v431 = vpow.pop %v430
      %v432 = vmul.f32 %v406, 1.442695
      %v433 = vpow.pop %v432
      %v434 = vmul.f32 %v407, 1.442695
      %v435 = vpow.pop %v434
      %v436 = vmul.f32 %v408, 1.442695
      %v437 = vpow.pop %v436
      %v438 = vmul.f32 %v409, 1.442695
      %v439 = vpow.pop %v438
      %v440 = vmul.f32 %v410, 1.442695
      %v441 = vpow.pop %v440
      %v442 = vmul.f32 %v411, 1.442695
      %v443 = vpow.pop %v442
      %v444 = vsel %vm347, %v413, 0.0
      %445 = vadd.xlane.f32.xlu0 %v444
      %v446 = vpop.xlane.xlu0 %445
      %v447 = vsel %vm347, %v415, 0.0
      %448 = vadd.xlane.f32.xlu0 %v447
      %v449 = vpop.xlane.xlu0 %448
      %v450 = vsel %vm347, %v417, 0.0
      %451 = vadd.xlane.f32.xlu0 %v450
      %v452 = vpop.xlane.xlu0 %451
      %v453 = vsel %vm347, %v419, 0.0
      %454 = vadd.xlane.f32.xlu0 %v453
      %v455 = vpop.xlane.xlu0 %454
      %v456 = vsel %vm347, %v421, 0.0
      %457 = vadd.xlane.f32.xlu0 %v456
      %v458 = vpop.xlane.xlu0 %457
      %v459 = vsel %vm347, %v423, 0.0
      %460 = vadd.xlane.f32.xlu0 %v459
      %v461 = vpop.xlane.xlu0 %460
      %v462 = vsel %vm347, %v425, 0.0
      %463 = vadd.xlane.f32.xlu0 %v462
      %v464 = vpop.xlane.xlu0 %463
      %v465 = vsel %vm347, %v427, 0.0
      %466 = vadd.xlane.f32.xlu0 %v465
      %v467 = vpop.xlane.xlu0 %466
      %v468 = vsel %vm347, %v429, 0.0
      %469 = vadd.xlane.f32.xlu0 %v468
      %v470 = vpop.xlane.xlu0 %469
      %v471 = vsel %vm347, %v431, 0.0
      %472 = vadd.xlane.f32.xlu0 %v471
      %v473 = vpop.xlane.xlu0 %472
      %v474 = vsel %vm347, %v433, 0.0
      %475 = vadd.xlane.f32.xlu0 %v474
      %v476 = vpop.xlane.xlu0 %475
      %v477 = vsel %vm347, %v435, 0.0
      %478 = vadd.xlane.f32.xlu0 %v477
      %v479 = vpop.xlane.xlu0 %478
      %v480 = vsel %vm347, %v437, 0.0
      %481 = vadd.xlane.f32.xlu0 %v480
      %v482 = vpop.xlane.xlu0 %481
      %v483 = vsel %vm347, %v439, 0.0
      %484 = vadd.xlane.f32.xlu0 %v483
      %v485 = vpop.xlane.xlu0 %484
      %v486 = vsel %vm347, %v441, 0.0
      %487 = vadd.xlane.f32.xlu0 %v486
      %v488 = vpop.xlane.xlu0 %487
      %v489 = vsel %vm347, %v443, 0.0
      %490 = vadd.xlane.f32.xlu0 %v489
      %v491 = vpop.xlane.xlu0 %490
      %v492 = vlog2.pop %v446
      %v493 = vmul.f32 %v492, 0.6931472
      %v494 = vlog2.pop %v449
      %v495 = vmul.f32 %v494, 0.6931472
      %v496 = vlog2.pop %v452
      %v497 = vmul.f32 %v496, 0.6931472
      %v498 = vlog2.pop %v455
      %v499 = vmul.f32 %v498, 0.6931472
      %v500 = vlog2.pop %v458
      %v501 = vmul.f32 %v500, 0.6931472
      %v502 = vlog2.pop %v461
      %v503 = vmul.f32 %v502, 0.6931472
      %v504 = vlog2.pop %v464
      %v505 = vmul.f32 %v504, 0.6931472
      %v506 = vlog2.pop %v467
      %v507 = vmul.f32 %v506, 0.6931472
      %v508 = vlog2.pop %v470
      %v509 = vmul.f32 %v508, 0.6931472
      %v510 = vlog2.pop %v473
      %v511 = vmul.f32 %v510, 0.6931472
      %v512 = vlog2.pop %v476
      %v513 = vmul.f32 %v512, 0.6931472
      %v514 = vlog2.pop %v479
      %v515 = vmul.f32 %v514, 0.6931472
      %v516 = vlog2.pop %v482
      %v517 = vmul.f32 %v516, 0.6931472
      %v518 = vlog2.pop %v485
      %v519 = vmul.f32 %v518, 0.6931472
      %v520 = vlog2.pop %v488
      %v521 = vmul.f32 %v520, 0.6931472
      %v522 = vlog2.pop %v491
      %v523 = vmul.f32 %v522, 0.6931472
      %v524 = vadd.f32 %v350, %v493
      %v525 = vadd.f32 %v353, %v495
      %v526 = vadd.f32 %v356, %v497
      %v527 = vadd.f32 %v359, %v499
      %v528 = vadd.f32 %v362, %v501
      %v529 = vadd.f32 %v365, %v503
      %v530 = vadd.f32 %v368, %v505
      %v531 = vadd.f32 %v371, %v507
      %v532 = vadd.f32 %v374, %v509
      %v533 = vadd.f32 %v377, %v511
      %v534 = vadd.f32 %v380, %v513
      %v535 = vadd.f32 %v383, %v515
      %v536 = vadd.f32 %v386, %v517
      %v537 = vadd.f32 %v389, %v519
      %v538 = vadd.f32 %v392, %v521
      %v539 = vadd.f32 %v395, %v523
      %v540 = vlaneseq
      %v541 = vand.u32 %v540, 127
      %542 = vset.pattern.permute.xlu0 0
      %543 = vperm.xlu0 %542, %v331
      %v544 = vpop.permute.xlu0 %543
      %545 = vset.pattern.permute.xlu0 0
      %546 = vperm.xlu0 %545, %v332
      %v547 = vpop.permute.xlu0 %546
      %548 = vset.pattern.permute.xlu0 0
      %549 = vperm.xlu0 %548, %v333
      %v550 = vpop.permute.xlu0 %549
      %551 = vset.pattern.permute.xlu0 0
      %552 = vperm.xlu0 %551, %v334
      %v553 = vpop.permute.xlu0 %552
      %554 = vset.pattern.permute.xlu0 0
      %555 = vperm.xlu0 %554, %v335
      %v556 = vpop.permute.xlu0 %555
      %557 = vset.pattern.permute.xlu0 0
      %558 = vperm.xlu0 %557, %v336
      %v559 = vpop.permute.xlu0 %558
      %560 = vset.pattern.permute.xlu0 0
      %561 = vperm.xlu0 %560, %v337
      %v562 = vpop.permute.xlu0 %561
      %563 = vset.pattern.permute.xlu0 0
      %564 = vperm.xlu0 %563, %v338
      %v565 = vpop.permute.xlu0 %564
      %566 = vset.pattern.permute.xlu0 0
      %567 = vperm.xlu0 %566, %v339
      %v568 = vpop.permute.xlu0 %567
      %569 = vset.pattern.permute.xlu0 0
      %570 = vperm.xlu0 %569, %v340
      %v571 = vpop.permute.xlu0 %570
      %572 = vset.pattern.permute.xlu0 0
      %573 = vperm.xlu0 %572, %v341
      %v574 = vpop.permute.xlu0 %573
      %575 = vset.pattern.permute.xlu0 0
      %576 = vperm.xlu0 %575, %v342
      %v577 = vpop.permute.xlu0 %576
      %578 = vset.pattern.permute.xlu0 0
      %579 = vperm.xlu0 %578, %v343
      %v580 = vpop.permute.xlu0 %579
      %581 = vset.pattern.permute.xlu0 0
      %582 = vperm.xlu0 %581, %v344
      %v583 = vpop.permute.xlu0 %582
      %584 = vset.pattern.permute.xlu0 0
      %585 = vperm.xlu0 %584, %v345
      %v586 = vpop.permute.xlu0 %585
      %587 = vset.pattern.permute.xlu0 0
      %588 = vperm.xlu0 %587, %v346
      %v589 = vpop.permute.xlu0 %588
      %vm590 = vcmp.eq.s32.totalorder %v541, %v544
      %vm591 = vcmp.eq.s32.totalorder %v541, %v547
      %vm592 = vcmp.eq.s32.totalorder %v541, %v550
      %vm593 = vcmp.eq.s32.totalorder %v541, %v553
      %vm594 = vcmp.eq.s32.totalorder %v541, %v556
      %vm595 = vcmp.eq.s32.totalorder %v541, %v559
      %vm596 = vcmp.eq.s32.totalorder %v541, %v562
      %vm597 = vcmp.eq.s32.totalorder %v541, %v565
      %vm598 = vcmp.eq.s32.totalorder %v541, %v568
      %vm599 = vcmp.eq.s32.totalorder %v541, %v571
      %vm600 = vcmp.eq.s32.totalorder %v541, %v574
      %vm601 = vcmp.eq.s32.totalorder %v541, %v577
      %vm602 = vcmp.eq.s32.totalorder %v541, %v580
      %vm603 = vcmp.eq.s32.totalorder %v541, %v583
      %vm604 = vcmp.eq.s32.totalorder %v541, %v586
      %vm605 = vcmp.eq.s32.totalorder %v541, %v589
      %v606 = vsel %vm590, %v315, 0.0
      %v607 = vsel %vm591, %v316, 0.0
      %v608 = vsel %vm592, %v317, 0.0
      %v609 = vsel %vm593, %v318, 0.0
      %v610 = vsel %vm594, %v319, 0.0
      %v611 = vsel %vm595, %v320, 0.0
      %v612 = vsel %vm596, %v321, 0.0
      %v613 = vsel %vm597, %v322, 0.0
      %v614 = vsel %vm598, %v323, 0.0
      %v615 = vsel %vm599, %v324, 0.0
      %v616 = vsel %vm600, %v325, 0.0
      %v617 = vsel %vm601, %v326, 0.0
      %v618 = vsel %vm602, %v327, 0.0
      %v619 = vsel %vm603, %v328, 0.0
      %v620 = vsel %vm604, %v329, 0.0
      %v621 = vsel %vm605, %v330, 0.0
      %v622 = vsel %vm347, %v606, 0.0
      %623 = vadd.xlane.f32.xlu0 %v622
      %v624 = vpop.xlane.xlu0 %623
      %v625 = vsel %vm347, %v607, 0.0
      %626 = vadd.xlane.f32.xlu0 %v625
      %v627 = vpop.xlane.xlu0 %626
      %v628 = vsel %vm347, %v608, 0.0
      %629 = vadd.xlane.f32.xlu0 %v628
      %v630 = vpop.xlane.xlu0 %629
      %v631 = vsel %vm347, %v609, 0.0
      %632 = vadd.xlane.f32.xlu0 %v631
      %v633 = vpop.xlane.xlu0 %632
      %v634 = vsel %vm347, %v610, 0.0
      %635 = vadd.xlane.f32.xlu0 %v634
      %v636 = vpop.xlane.xlu0 %635
      %v637 = vsel %vm347, %v611, 0.0
      %638 = vadd.xlane.f32.xlu0 %v637
      %v639 = vpop.xlane.xlu0 %638
      %v640 = vsel %vm347, %v612, 0.0
      %641 = vadd.xlane.f32.xlu0 %v640
      %v642 = vpop.xlane.xlu0 %641
      %v643 = vsel %vm347, %v613, 0.0
      %644 = vadd.xlane.f32.xlu0 %v643
      %v645 = vpop.xlane.xlu0 %644
      %v646 = vsel %vm347, %v614, 0.0
      %647 = vadd.xlane.f32.xlu0 %v646
      %v648 = vpop.xlane.xlu0 %647
      %v649 = vsel %vm347, %v615, 0.0
      %650 = vadd.xlane.f32.xlu0 %v649
      %v651 = vpop.xlane.xlu0 %650
      %v652 = vsel %vm347, %v616, 0.0
      %653 = vadd.xlane.f32.xlu0 %v652
      %v654 = vpop.xlane.xlu0 %653
      %v655 = vsel %vm347, %v617, 0.0
      %656 = vadd.xlane.f32.xlu0 %v655
      %v657 = vpop.xlane.xlu0 %656
      %v658 = vsel %vm347, %v618, 0.0
      %659 = vadd.xlane.f32.xlu0 %v658
      %v660 = vpop.xlane.xlu0 %659
      %v661 = vsel %vm347, %v619, 0.0
      %662 = vadd.xlane.f32.xlu0 %v661
      %v663 = vpop.xlane.xlu0 %662
      %v664 = vsel %vm347, %v620, 0.0
      %665 = vadd.xlane.f32.xlu0 %v664
      %v666 = vpop.xlane.xlu0 %665
      %v667 = vsel %vm347, %v621, 0.0
      %668 = vadd.xlane.f32.xlu0 %v667
      %v669 = vpop.xlane.xlu0 %668
      %v670 = vsub.f32 %v524, %v624
      %v671 = vsub.f32 %v525, %v627
      %v672 = vsub.f32 %v526, %v630
      %v673 = vsub.f32 %v527, %v633
      %v674 = vsub.f32 %v528, %v636
      %v675 = vsub.f32 %v529, %v639
      %v676 = vsub.f32 %v530, %v642
      %v677 = vsub.f32 %v531, %v645
      %v678 = vsub.f32 %v532, %v648
      %v679 = vsub.f32 %v533, %v651
      %v680 = vsub.f32 %v534, %v654
      %v681 = vsub.f32 %v535, %v657
      %v682 = vsub.f32 %v536, %v660
      %v683 = vsub.f32 %v537, %v663
      %v684 = vsub.f32 %v538, %v666
      %v685 = vsub.f32 %v539, %v669
      %s686 = smul.u32 %s19, 2
      %s687 = sadd.s32 %s686, %s20
      %s688 = smul.u32 %s687, 128
      %v689 = vlaneseq
      %v690 = vshrl.u32 %v689, 7
      %v691 = vadd.s32 %v690, 8
      %v692 = vadd.s32 %v690, 16
      %v693 = vadd.s32 %v690, 24
      %v694 = vadd.s32 %v690, 32
      %v695 = vadd.s32 %v690, 40
      %v696 = vadd.s32 %v690, 48
      %v697 = vadd.s32 %v690, 56
      %v698 = vadd.s32 %v690, 64
      %v699 = vadd.s32 %v690, 72
      %v700 = vadd.s32 %v690, 80
      %v701 = vadd.s32 %v690, 88
      %v702 = vadd.s32 %v690, 96
      %v703 = vadd.s32 %v690, 104
      %v704 = vadd.s32 %v690, 112
      %v705 = vadd.s32 %v690, 120
      %v706 = vstv %s688
      %v707 = vadd.s32 %v706, %v690
      %v708 = vadd.s32 %v706, %v691
      %v709 = vadd.s32 %v706, %v692
      %v710 = vadd.s32 %v706, %v693
      %v711 = vadd.s32 %v706, %v694
      %v712 = vadd.s32 %v706, %v695
      %v713 = vadd.s32 %v706, %v696
      %v714 = vadd.s32 %v706, %v697
      %v715 = vadd.s32 %v706, %v698
      %v716 = vadd.s32 %v706, %v699
      %v717 = vadd.s32 %v706, %v700
      %v718 = vadd.s32 %v706, %v701
      %v719 = vadd.s32 %v706, %v702
      %v720 = vadd.s32 %v706, %v703
      %v721 = vadd.s32 %v706, %v704
      %v722 = vadd.s32 %v706, %v705
      %vm723 = vcmp.ne.s32.totalorder %v331, 0
      %vm724 = vcmp.ne.s32.totalorder %v332, 0
      %vm725 = vcmp.ne.s32.totalorder %v333, 0
      %vm726 = vcmp.ne.s32.totalorder %v334, 0
      %vm727 = vcmp.ne.s32.totalorder %v335, 0
      %vm728 = vcmp.ne.s32.totalorder %v336, 0
      %vm729 = vcmp.ne.s32.totalorder %v337, 0
      %vm730 = vcmp.ne.s32.totalorder %v338, 0
      %vm731 = vcmp.ne.s32.totalorder %v339, 0
      %vm732 = vcmp.ne.s32.totalorder %v340, 0
      %vm733 = vcmp.ne.s32.totalorder %v341, 0
      %vm734 = vcmp.ne.s32.totalorder %v342, 0
      %vm735 = vcmp.ne.s32.totalorder %v343, 0
      %vm736 = vcmp.ne.s32.totalorder %v344, 0
      %vm737 = vcmp.ne.s32.totalorder %v345, 0
      %vm738 = vcmp.ne.s32.totalorder %v346, 0
      %vm739 = vcmp.lt.s32.totalorder %v707, 300
      %vm740 = vcmp.lt.s32.totalorder %v708, 300
      %vm741 = vcmp.lt.s32.totalorder %v709, 300
      %vm742 = vcmp.lt.s32.totalorder %v710, 300
      %vm743 = vcmp.lt.s32.totalorder %v711, 300
      %vm744 = vcmp.lt.s32.totalorder %v712, 300
      %vm745 = vcmp.lt.s32.totalorder %v713, 300
      %vm746 = vcmp.lt.s32.totalorder %v714, 300
      %vm747 = vcmp.lt.s32.totalorder %v715, 300
      %vm748 = vcmp.lt.s32.totalorder %v716, 300
      %vm749 = vcmp.lt.s32.totalorder %v717, 300
      %vm750 = vcmp.lt.s32.totalorder %v718, 300
      %vm751 = vcmp.lt.s32.totalorder %v719, 300
      %vm752 = vcmp.lt.s32.totalorder %v720, 300
      %vm753 = vcmp.lt.s32.totalorder %v721, 300
      %vm754 = vcmp.lt.s32.totalorder %v722, 300
      %vm755 = vmand %vm723, %vm739
      %vm756 = vmand %vm724, %vm740
      %vm757 = vmand %vm725, %vm741
      %vm758 = vmand %vm726, %vm742
      %vm759 = vmand %vm727, %vm743
      %vm760 = vmand %vm728, %vm744
      %vm761 = vmand %vm729, %vm745
      %vm762 = vmand %vm730, %vm746
      %vm763 = vmand %vm731, %vm747
      %vm764 = vmand %vm732, %vm748
      %vm765 = vmand %vm733, %vm749
      %vm766 = vmand %vm734, %vm750
      %vm767 = vmand %vm735, %vm751
      %vm768 = vmand %vm736, %vm752
      %vm769 = vmand %vm737, %vm753
      %vm770 = vmand %vm738, %vm754
      %v771 = vld [vmem:[%s304] sm:$0x1]
      %v772 = vsel %vm755, %v670, 0.0
      %v773 = vsel %vm756, %v671, 0.0
      %v774 = vsel %vm757, %v672, 0.0
      %v775 = vsel %vm758, %v673, 0.0
      %v776 = vsel %vm759, %v674, 0.0
      %v777 = vsel %vm760, %v675, 0.0
      %v778 = vsel %vm761, %v676, 0.0
      %v779 = vsel %vm762, %v677, 0.0
      %v780 = vsel %vm763, %v678, 0.0
      %v781 = vsel %vm764, %v679, 0.0
      %v782 = vsel %vm765, %v680, 0.0
      %v783 = vsel %vm766, %v681, 0.0
      %v784 = vsel %vm767, %v682, 0.0
      %v785 = vsel %vm768, %v683, 0.0
      %v786 = vsel %vm769, %v684, 0.0
      %v787 = vsel %vm770, %v685, 0.0
      %vm788 = vcmask 7168
      %v789 = vsel %vm788, %v772, 0.0
      %v790 = vsel %vm788, %v773, 0.0
      %v791 = vadd.f32 %v789, %v790
      %v792 = vsel %vm788, %v774, 0.0
      %v793 = vadd.f32 %v791, %v792
      %v794 = vsel %vm788, %v775, 0.0
      %v795 = vadd.f32 %v793, %v794
      %v796 = vsel %vm788, %v776, 0.0
      %v797 = vadd.f32 %v795, %v796
      %v798 = vsel %vm788, %v777, 0.0
      %v799 = vadd.f32 %v797, %v798
      %v800 = vsel %vm788, %v778, 0.0
      %v801 = vadd.f32 %v799, %v800
      %v802 = vsel %vm788, %v779, 0.0
      %v803 = vadd.f32 %v801, %v802
      %v804 = vsel %vm788, %v780, 0.0
      %v805 = vadd.f32 %v803, %v804
      %v806 = vsel %vm788, %v781, 0.0
      %v807 = vadd.f32 %v805, %v806
      %v808 = vsel %vm788, %v782, 0.0
      %v809 = vadd.f32 %v807, %v808
      %v810 = vsel %vm788, %v783, 0.0
      %v811 = vadd.f32 %v809, %v810
      %v812 = vsel %vm788, %v784, 0.0
      %v813 = vadd.f32 %v811, %v812
      %v814 = vsel %vm788, %v785, 0.0
      %v815 = vadd.f32 %v813, %v814
      %v816 = vsel %vm788, %v786, 0.0
      %v817 = vadd.f32 %v815, %v816
      %v818 = vsel %vm788, %v787, 0.0
      %v819 = vadd.f32 %v817, %v818
      %820 = vadd.xlane.f32.xlu0 %v819
      %v821 = vpop.xlane.xlu0 %820
      %v822 = vrot.slane %v821, 4
      %v823 = vadd.f32 %v821, %v822
      %v824 = vrot.slane %v823, 2
      %v825 = vadd.f32 %v823, %v824
      %v826 = vrot.slane %v825, 1
      %v827 = vadd.f32 %v825, %v826
      %s828 = vtos %v827
      %v829 = vstv %s828
      %v830 = vadd.f32 %v771, %v829
      %vm831 = vcmask 0
      %832 = vst.msk [vmem:[%s304] sm:$0x1] %vm831, %v830
      %v833 = vld [vmem:[%s307] sm:$0x1]
      %v834 = vsel %vm755, 1, 0
      %v835 = vsel %vm756, 1, 0
      %v836 = vsel %vm757, 1, 0
      %v837 = vsel %vm758, 1, 0
      %v838 = vsel %vm759, 1, 0
      %v839 = vsel %vm760, 1, 0
      %v840 = vsel %vm761, 1, 0
      %v841 = vsel %vm762, 1, 0
      %v842 = vsel %vm763, 1, 0
      %v843 = vsel %vm764, 1, 0
      %v844 = vsel %vm765, 1, 0
      %v845 = vsel %vm766, 1, 0
      %v846 = vsel %vm767, 1, 0
      %v847 = vsel %vm768, 1, 0
      %v848 = vsel %vm769, 1, 0
      %v849 = vsel %vm770, 1, 0
      %v850 = vcvt.s32.f32 %v834
      %v851 = vcvt.s32.f32 %v835
      %v852 = vcvt.s32.f32 %v836
      %v853 = vcvt.s32.f32 %v837
      %v854 = vcvt.s32.f32 %v838
      %v855 = vcvt.s32.f32 %v839
      %v856 = vcvt.s32.f32 %v840
      %v857 = vcvt.s32.f32 %v841
      %v858 = vcvt.s32.f32 %v842
      %v859 = vcvt.s32.f32 %v843
      %v860 = vcvt.s32.f32 %v844
      %v861 = vcvt.s32.f32 %v845
      %v862 = vcvt.s32.f32 %v846
      %v863 = vcvt.s32.f32 %v847
      %v864 = vcvt.s32.f32 %v848
      %v865 = vcvt.s32.f32 %v849
      %v866 = vsel %vm788, %v850, 0.0
      %v867 = vsel %vm788, %v851, 0.0
      %v868 = vadd.f32 %v866, %v867
      %v869 = vsel %vm788, %v852, 0.0
      %v870 = vadd.f32 %v868, %v869
      %v871 = vsel %vm788, %v853, 0.0
      %v872 = vadd.f32 %v870, %v871
      %v873 = vsel %vm788, %v854, 0.0
      %v874 = vadd.f32 %v872, %v873
      %v875 = vsel %vm788, %v855, 0.0
      %v876 = vadd.f32 %v874, %v875
      %v877 = vsel %vm788, %v856, 0.0
      %v878 = vadd.f32 %v876, %v877
      %v879 = vsel %vm788, %v857, 0.0
      %v880 = vadd.f32 %v878, %v879
      %v881 = vsel %vm788, %v858, 0.0
      %v882 = vadd.f32 %v880, %v881
      %v883 = vsel %vm788, %v859, 0.0
      %v884 = vadd.f32 %v882, %v883
      %v885 = vsel %vm788, %v860, 0.0
      %v886 = vadd.f32 %v884, %v885
      %v887 = vsel %vm788, %v861, 0.0
      %v888 = vadd.f32 %v886, %v887
      %v889 = vsel %vm788, %v862, 0.0
      %v890 = vadd.f32 %v888, %v889
      %v891 = vsel %vm788, %v863, 0.0
      %v892 = vadd.f32 %v890, %v891
      %v893 = vsel %vm788, %v864, 0.0
      %v894 = vadd.f32 %v892, %v893
      %v895 = vsel %vm788, %v865, 0.0
      %v896 = vadd.f32 %v894, %v895
      %897 = vadd.xlane.f32.xlu0 %v896
      %v898 = vpop.xlane.xlu0 %897
      %v899 = vrot.slane %v898, 4
      %v900 = vadd.f32 %v898, %v899
      %v901 = vrot.slane %v900, 2
      %v902 = vadd.f32 %v900, %v901
      %v903 = vrot.slane %v902, 1
      %v904 = vadd.f32 %v902, %v903
      %s905 = vtos %v904
      %v906 = vstv %s905
      %v907 = vadd.f32 %v833, %v906
      %908 = vst.msk [vmem:[%s307] sm:$0x1] %vm831, %v907
      %p909 = scmp.lt.s32.totalorder %s19, 1
      %s910 = scalar_select %p909, %s19, 1
      %s911 = scalar_lea.vmem %s2, %s910
      %p912 = scmp.lt.s32.totalorder %s19, 1
      %s913 = scalar_select %p912, %s19, 1
      %s914 = scalar_lea.vmem %s3, %s913
      // Predicated region
      $region33: #{tpu_custom_call.1} parent=27 // pred_check
        %p915 = pneg %p113
      $region34: #{tpu_custom_call.1} parent=27 // pred_check_branch
        %917 = sbr.rel (%p915) target = $region36
      $region35: #{tpu_custom_call.1} parent=27 // pred_region
        _
      $region36: #{tpu_custom_call.1} parent=27 // pred_fallthru
        _
      // Predicated region
      $region37: #{tpu_custom_call.1} parent=27 // pred_check
        %p918 = pneg %p139
      $region38: #{tpu_custom_call.1} parent=27 // pred_check_branch
        %920 = sbr.rel (%p918) target = $region40
      $region39: #{tpu_custom_call.1} parent=27 // pred_region
        _
      $region40: #{tpu_custom_call.1} parent=27 // pred_fallthru
        _
    $region28: #{tpu_custom_call.1} parent=5 // pred_fallthru
      _
    %p921 = scmp.le.s32.totalorder 2, %s10
    // Predicated region
    $region41: #{tpu_custom_call.1} parent=5 // pred_check
      %p922 = pneg %p921
    $region42: #{tpu_custom_call.1} parent=5 // pred_check_branch
      %924 = sbr.rel (%p922) target = $region44
    $region43: #{tpu_custom_call.1} parent=5 // pred_region
      %s925 = ssub.s32 %s10, 2
      // Predicated region
      $region45: #{tpu_custom_call.1} parent=43 // pred_check
        %p926 = pneg %p119
      $region46: #{tpu_custom_call.1} parent=43 // pred_check_branch
        %928 = sbr.rel (%p926) target = $region48
      $region47: #{tpu_custom_call.1} parent=43 // pred_region
        %p929 = scmp.lt.s32.totalorder %s21, 1
        %s930 = scalar_select %p929, %s21, 1
        %s931 = scalar_lea.vmem %s2, %s930
      $region48: #{tpu_custom_call.1} parent=43 // pred_fallthru
        _
      // Predicated region
      $region49: #{tpu_custom_call.1} parent=43 // pred_check
        %p932 = pneg %p145
      $region50: #{tpu_custom_call.1} parent=43 // pred_check_branch
        %934 = sbr.rel (%p932) target = $region52
      $region51: #{tpu_custom_call.1} parent=43 // pred_region
        %p935 = scmp.lt.s32.totalorder %s21, 1
        %s936 = scalar_select %p935, %s21, 1
        %s937 = scalar_lea.vmem %s3, %s936
      $region52: #{tpu_custom_call.1} parent=43 // pred_fallthru
        _
    $region44: #{tpu_custom_call.1} parent=5 // pred_fallthru
      _
  $region6: #{tpu_custom_call.1} parent=0 // loop_footer
    %s14 = sadd.s32 1, %s10
  $region7: #{tpu_custom_call.1} parent=0 // loop_footer_branch
    %9 = sbr.rel target = $region3
  $region8: #{tpu_custom_call.1} parent=0 // loop_exit
    _

</llo_original>
